<compile_context>
chip_gen: v5e
topology: v5e:2x2
jax: 0.10.0
libtpu: 0.0.40
codegen_flags: <defaults>
</compile_context>

<pallas_src>
import functools

import jax
import jax.numpy as jnp
from jax.experimental import pallas as pl
from jax.experimental.pallas import tpu as pltpu

H = 64          # hidden width
OUT = 20        # real output classes
OUT_PAD = 128   # lane-dense padded head width used *inside* the kernel
NEG_SLOPE = 0.01          # nn.LeakyReLU default
BN_EPS = 1e-5
_NEG_BIG = -1e30          # finite "-inf" for padded logits (avoids inf-inf NaN)
TB_MAX = 2048             # max batch-tile rows (VMEM ~10-14 MiB double-buffered)


def _leaky_relu(x):
    return jnp.where(x > 0, x, NEG_SLOPE * x)


def _round_up(n, m):
    return (n + m - 1) // m * m


def net_kernel(x_ref,
               w1_ref, b1_ref,
               w2_ref, b2_ref,
               w3_ref, b3_ref,
               w4_ref, b4_ref,
               out_ref):
    x = x_ref[...]                                            # (tb, 1) f32

    # block 1: Linear(1,64) (+ folded BN) as a VPU broadcast multiply-add —
    # a K=1 matmul would waste an MXU push/pop on every grid step.
    h = _leaky_relu(x * w1_ref[...] + b1_ref[...])            # (tb, 64) f32

    # blocks 2/3: Linear(64,64) (+ folded BN) + LeakyReLU on the MXU.
    w2 = w2_ref[...]
    h = _leaky_relu(
        jnp.dot(h.astype(w2.dtype), w2, preferred_element_type=jnp.float32)
        + b2_ref[...])
    w3 = w3_ref[...]
    h = _leaky_relu(
        jnp.dot(h.astype(w3.dtype), w3, preferred_element_type=jnp.float32)
        + b3_ref[...])

    # head: Linear(64, 128-padded); padded columns have zero weights and a
    # -1e30 bias so their softmax contribution is exactly 0.
    w4 = w4_ref[...]
    logits = (jnp.dot(h.astype(w4.dtype), w4, preferred_element_type=jnp.float32)
              + b4_ref[...])                                  # (tb, 128) f32

    # numerically stable softmax over the (lane) feature axis; exact divide so
    # rows sum to 1 within f32 rounding.
    m = jnp.max(logits, axis=1, keepdims=True)
    e = jnp.exp(logits - m)
    s = jnp.sum(e, axis=1, keepdims=True)
    out_ref[...] = e[:, :OUT] / s                             # narrow (tb, 20) store


def init_params(key):
    """Deterministic parameter init mimicking PyTorch defaults (fp32)."""
    ks = jax.random.split(key, 8)

    def linear(kw, kb, fan_in, fan_out):
        bound = 1.0 / jnp.sqrt(fan_in)
        w = jax.random.uniform(kw, (fan_in, fan_out), jnp.float32, -bound, bound)
        b = jax.random.uniform(kb, (1, fan_out), jnp.float32, -bound, bound)
        return w, b

    w1, b1 = linear(ks[0], ks[1], 1, H)
    w2, b2 = linear(ks[2], ks[3], H, H)
    w3, b3 = linear(ks[4], ks[5], H, H)
    w4, b4 = linear(ks[6], ks[7], H, OUT)

    def bn(n):
        gamma = jnp.ones((1, n), jnp.float32)
        beta = jnp.zeros((1, n), jnp.float32)
        run_mean = jnp.zeros((1, n), jnp.float32)
        run_var = jnp.ones((1, n), jnp.float32)
        scale = gamma / jnp.sqrt(run_var + BN_EPS)   # inference-mode BN fold
        shift = beta - run_mean * scale
        return scale, shift

    s1, t1 = bn(H)
    s2, t2 = bn(H)
    s3, t3 = bn(H)

    return (w1, b1, s1, t1, w2, b2, s2, t2, w3, b3, s3, t3, w4, b4)


@functools.partial(jax.jit, static_argnames=("tb", "matmul_dtype"))
def _net_forward_impl(x, params, tb, matmul_dtype):
    B = x.shape[0]
    (w1, b1, s1, t1, w2, b2, s2, t2, w3, b3, s3, t3, w4, b4) = params

    # ---- parameter glue (fused by XLA, outside the kernel) -----------------
    # Fold inference BatchNorm into the preceding Linear:
    #   (x @ W + b) * s + t  ==  x @ (W * s) + (b * s + t)
    w1f = w1 * s1                      # stays f32 (VPU layer)
    b1f = b1 * s1 + t1
    w2f = (w2 * s2).astype(matmul_dtype)
    b2f = b2 * s2 + t2
    w3f = (w3 * s3).astype(matmul_dtype)
    b3f = b3 * s3 + t3

    # Lane-dense head inside the kernel: pad to 128 output columns.
    w4p = jnp.pad(w4, ((0, 0), (0, OUT_PAD - OUT))).astype(matmul_dtype)
    b4p = jnp.pad(b4, ((0, 0), (0, OUT_PAD - OUT)), constant_values=_NEG_BIG)

    # Pad the batch to a multiple of the tile size.
    B_pad = _round_up(B, tb)
    if B_pad != B:
        x = jnp.concatenate([x, jnp.zeros((B_pad - B, 1), x.dtype)], axis=0)

    def rep(shape):  # replicated (parameter) block, resident across the grid
        return pl.BlockSpec(shape, lambda i: (0, 0))

    out = pl.pallas_call(
        net_kernel,
        out_shape=jax.ShapeDtypeStruct((B_pad, OUT), jnp.float32),
        grid_spec=pltpu.PrefetchScalarGridSpec(
            num_scalar_prefetch=0,
            grid=(B_pad // tb,),
            in_specs=[
                pl.BlockSpec((tb, 1), lambda i: (i, 0)),     # x
                rep((1, H)), rep((1, H)),                    # w1f, b1f
                rep((H, H)), rep((1, H)),                    # w2f, b2f
                rep((H, H)), rep((1, H)),                    # w3f, b3f
                rep((H, OUT_PAD)), rep((1, OUT_PAD)),        # w4p, b4p
            ],
            # Last block dim (20) equals the full array dim -> legal, and the
            # kernel writes only the useful 80 B/row instead of 512 B/row.
            out_specs=pl.BlockSpec((tb, OUT), lambda i: (i, 0)),
        ),
        compiler_params=pltpu.CompilerParams(
            dimension_semantics=("parallel",),    # shards grid across TCs on v7x
            vmem_limit_bytes=48 * 1024 * 1024),   # headroom for tb=2048 on v5e
    )(x, w1f, b1f, w2f, b2f, w3f, b3f, w4p, b4p)

    # Only a row slice (cheap, often absent); the column slice is gone.
    return out if B_pad == B else out[:B]


def net_forward(x, params, tb=None, matmul_dtype=jnp.float32):
    """x: (B, 1) float32 -> softmax probs (B, 20) float32.

    matmul_dtype=jnp.bfloat16 uses the bf16-native MXU path (v6e/v7x).
    """
    B = x.shape[0]
    if tb is None:
        if B <= 8:
            tb = 8
        else:
            # Keep >= 2 grid steps (both v7x TensorCores busy), grow the tile
            # with B so the ~0.35 us per-grid-step overhead amortizes, and cap
            # at TB_MAX rows so per-step VMEM stays well under the limit.
            tb = min(TB_MAX, _round_up((B + 1) // 2, 8))
    return _net_forward_impl(x, params, tb=tb, matmul_dtype=matmul_dtype)


def net_reference(x, params):
    """Plain-JAX reference of the same forward pass (unfolded params)."""
    (w1, b1, s1, t1, w2, b2, s2, t2, w3, b3, s3, t3, w4, b4) = params
    h = _leaky_relu((x @ w1 + b1) * s1 + t1)
    h = _leaky_relu((h @ w2 + b2) * s2 + t2)
    h = _leaky_relu((h @ w3 + b3) * s3 + t3)
    logits = h @ w4 + b4
    return jax.nn.softmax(logits, axis=1)


if __name__ == "__main__":
    key = jax.random.PRNGKey(0)
    k_param, k_x = jax.random.split(key)

    params = init_params(k_param)

    # Case 1: small batch -> 2 grid steps of 8 rows each (both TCs on v7x).
    B = 16
    x = jax.random.normal(k_x, (B, 1), jnp.float32)
    out = jax.block_until_ready(net_forward(x, params))
    ref = net_reference(x, params)
    assert out.shape == (B, OUT)
    assert jnp.allclose(jnp.sum(out, axis=1), 1.0, atol=1e-3)
    assert jnp.allclose(out, ref, atol=2e-3, rtol=2e-3)

    # Case 2: multi-block grid with batch padding (B not a multiple of tb).
    B2 = 40
    x2 = jax.random.normal(jax.random.PRNGKey(1), (B2, 1), jnp.float32)
    out2 = jax.block_until_ready(net_forward(x2, params, tb=16))
    ref2 = net_reference(x2, params)
    assert out2.shape == (B2, OUT)
    assert jnp.allclose(jnp.sum(out2, axis=1), 1.0, atol=1e-3)
    assert jnp.allclose(out2, ref2, atol=2e-3, rtol=2e-3)

    # Case 3: bf16 matmul path (bf16-native MXUs on v6e/v7x); looser tolerance
    # against the f32 reference, but exact divide keeps row sums at 1.
    out3 = jax.block_until_ready(
        net_forward(x2, params, tb=16, matmul_dtype=jnp.bfloat16))
    assert out3.shape == (B2, OUT)
    assert jnp.allclose(jnp.sum(out3, axis=1), 1.0, atol=1e-3)
    assert jnp.allclose(out3, ref2, atol=2e-2, rtol=2e-2)

    print("KERNEL_OK")
</pallas_src>

<mosaic_0001>
module attributes {stable_mosaic.version = 11 : i64} {
  func.func @net_kernel(%arg0: i32, %arg1: memref<8x1xf32, #tpu.memory_space<vmem>>, %arg2: memref<1x64xf32, #tpu.memory_space<vmem>>, %arg3: memref<1x64xf32, #tpu.memory_space<vmem>>, %arg4: memref<64x64xf32, #tpu.memory_space<vmem>>, %arg5: memref<1x64xf32, #tpu.memory_space<vmem>>, %arg6: memref<64x64xf32, #tpu.memory_space<vmem>>, %arg7: memref<1x64xf32, #tpu.memory_space<vmem>>, %arg8: memref<64x128xf32, #tpu.memory_space<vmem>>, %arg9: memref<1x128xf32, #tpu.memory_space<vmem>>, %arg10: memref<8x20xf32, #tpu.memory_space<vmem>>) attributes {dimension_semantics = [#tpu.dimension_semantics<parallel>], iteration_bounds = array<i64: 2>, scalar_prefetch = 0 : i64, scratch_operands = 0 : i64, tpu.core_type = #tpu.core_type<tc>, window_params = [{transform_indices = @transform_0, window_bounds = array<i64: 8, 1>}, {pipeline_mode = #tpu.pipeline_mode<synchronous>, transform_indices = @transform_1, window_bounds = array<i64: 1, 64>}, {pipeline_mode = #tpu.pipeline_mode<synchronous>, transform_indices = @transform_2, window_bounds = array<i64: 1, 64>}, {pipeline_mode = #tpu.pipeline_mode<synchronous>, transform_indices = @transform_3, window_bounds = array<i64: 64, 64>}, {pipeline_mode = #tpu.pipeline_mode<synchronous>, transform_indices = @transform_4, window_bounds = array<i64: 1, 64>}, {pipeline_mode = #tpu.pipeline_mode<synchronous>, transform_indices = @transform_5, window_bounds = array<i64: 64, 64>}, {pipeline_mode = #tpu.pipeline_mode<synchronous>, transform_indices = @transform_6, window_bounds = array<i64: 1, 64>}, {pipeline_mode = #tpu.pipeline_mode<synchronous>, transform_indices = @transform_7, window_bounds = array<i64: 64, 128>}, {pipeline_mode = #tpu.pipeline_mode<synchronous>, transform_indices = @transform_8, window_bounds = array<i64: 1, 128>}, {transform_indices = @transform_9, window_bounds = array<i64: 8, 20>}]} {
    %c0 = arith.constant 0 : index
    %c0_0 = arith.constant 0 : index
    %0 = vector.load %arg1[%c0, %c0_0] : memref<8x1xf32, #tpu.memory_space<vmem>>, vector<8x1xf32>
    %c0_1 = arith.constant 0 : index
    %c0_2 = arith.constant 0 : index
    %1 = vector.load %arg2[%c0_1, %c0_2] : memref<1x64xf32, #tpu.memory_space<vmem>>, vector<1x64xf32>
    %2 = vector.broadcast %0 : vector<8x1xf32> to vector<8x64xf32>
    %3 = vector.broadcast %1 : vector<1x64xf32> to vector<8x64xf32>
    %4 = arith.mulf %2, %3 : vector<8x64xf32>
    %c0_3 = arith.constant 0 : index
    %c0_4 = arith.constant 0 : index
    %5 = vector.load %arg3[%c0_3, %c0_4] : memref<1x64xf32, #tpu.memory_space<vmem>>, vector<1x64xf32>
    %6 = vector.broadcast %5 : vector<1x64xf32> to vector<8x64xf32>
    %7 = arith.addf %4, %6 : vector<8x64xf32>
    %cst = arith.constant 0.000000e+00 : f32
    %8 = vector.broadcast %cst : f32 to vector<8x64xf32>
    %9 = arith.cmpf ogt, %7, %8 : vector<8x64xf32>
    %cst_5 = arith.constant 0.00999999977 : f32
    %10 = vector.broadcast %cst_5 : f32 to vector<8x64xf32>
    %11 = arith.mulf %10, %7 : vector<8x64xf32>
    %12 = arith.select %9, %7, %11 : vector<8x64xi1>, vector<8x64xf32>
    %c0_6 = arith.constant 0 : index
    %c0_7 = arith.constant 0 : index
    %13 = vector.load %arg4[%c0_6, %c0_7] : memref<64x64xf32, #tpu.memory_space<vmem>>, vector<64x64xf32>
    %cst_8 = arith.constant dense<0.000000e+00> : vector<8x64xf32>
    %14 = tpu.matmul %12, %13, %cst_8 {dimension_numbers = #tpu.dot_dimension_numbers<[1], [0], [0], [1], [0, 0, 1, 1], [], []>} : vector<8x64xf32>, vector<64x64xf32>, vector<8x64xf32> -> vector<8x64xf32>
    %c0_9 = arith.constant 0 : index
    %c0_10 = arith.constant 0 : index
    %15 = vector.load %arg5[%c0_9, %c0_10] : memref<1x64xf32, #tpu.memory_space<vmem>>, vector<1x64xf32>
    %16 = vector.broadcast %15 : vector<1x64xf32> to vector<8x64xf32>
    %17 = arith.addf %14, %16 : vector<8x64xf32>
    %cst_11 = arith.constant 0.000000e+00 : f32
    %18 = vector.broadcast %cst_11 : f32 to vector<8x64xf32>
    %19 = arith.cmpf ogt, %17, %18 : vector<8x64xf32>
    %cst_12 = arith.constant 0.00999999977 : f32
    %20 = vector.broadcast %cst_12 : f32 to vector<8x64xf32>
    %21 = arith.mulf %20, %17 : vector<8x64xf32>
    %22 = arith.select %19, %17, %21 : vector<8x64xi1>, vector<8x64xf32>
    %c0_13 = arith.constant 0 : index
    %c0_14 = arith.constant 0 : index
    %23 = vector.load %arg6[%c0_13, %c0_14] : memref<64x64xf32, #tpu.memory_space<vmem>>, vector<64x64xf32>
    %cst_15 = arith.constant dense<0.000000e+00> : vector<8x64xf32>
    %24 = tpu.matmul %22, %23, %cst_15 {dimension_numbers = #tpu.dot_dimension_numbers<[1], [0], [0], [1], [0, 0, 1, 1], [], []>} : vector<8x64xf32>, vector<64x64xf32>, vector<8x64xf32> -> vector<8x64xf32>
    %c0_16 = arith.constant 0 : index
    %c0_17 = arith.constant 0 : index
    %25 = vector.load %arg7[%c0_16, %c0_17] : memref<1x64xf32, #tpu.memory_space<vmem>>, vector<1x64xf32>
    %26 = vector.broadcast %25 : vector<1x64xf32> to vector<8x64xf32>
    %27 = arith.addf %24, %26 : vector<8x64xf32>
    %cst_18 = arith.constant 0.000000e+00 : f32
    %28 = vector.broadcast %cst_18 : f32 to vector<8x64xf32>
    %29 = arith.cmpf ogt, %27, %28 : vector<8x64xf32>
    %cst_19 = arith.constant 0.00999999977 : f32
    %30 = vector.broadcast %cst_19 : f32 to vector<8x64xf32>
    %31 = arith.mulf %30, %27 : vector<8x64xf32>
    %32 = arith.select %29, %27, %31 : vector<8x64xi1>, vector<8x64xf32>
    %c0_20 = arith.constant 0 : index
    %c0_21 = arith.constant 0 : index
    %33 = vector.load %arg8[%c0_20, %c0_21] : memref<64x128xf32, #tpu.memory_space<vmem>>, vector<64x128xf32>
    %cst_22 = arith.constant dense<0.000000e+00> : vector<8x128xf32>
    %34 = tpu.matmul %32, %33, %cst_22 {dimension_numbers = #tpu.dot_dimension_numbers<[1], [0], [0], [1], [0, 0, 1, 1], [], []>} : vector<8x64xf32>, vector<64x128xf32>, vector<8x128xf32> -> vector<8x128xf32>
    %c0_23 = arith.constant 0 : index
    %c0_24 = arith.constant 0 : index
    %35 = vector.load %arg9[%c0_23, %c0_24] : memref<1x128xf32, #tpu.memory_space<vmem>>, vector<1x128xf32>
    %36 = vector.broadcast %35 : vector<1x128xf32> to vector<8x128xf32>
    %37 = arith.addf %34, %36 : vector<8x128xf32>
    %cst_25 = arith.constant dense<0xFF800000> : vector<8xf32>
    %38 = vector.multi_reduction <maximumf>, %37, %cst_25 [1] : vector<8x128xf32> to vector<8xf32>
    %39 = vector.shape_cast %38 : vector<8xf32> to vector<8x1xf32>
    %40 = vector.broadcast %39 : vector<8x1xf32> to vector<8x128xf32>
    %41 = arith.subf %37, %40 : vector<8x128xf32>
    %42 = math.exp %41 : vector<8x128xf32>
    %cst_26 = arith.constant dense<0.000000e+00> : vector<8xf32>
    %43 = vector.multi_reduction <add>, %42, %cst_26 [1] : vector<8x128xf32> to vector<8xf32>
    %44 = vector.shape_cast %43 : vector<8xf32> to vector<8x1xf32>
    %45 = vector.extract_strided_slice %42 {offsets = [0, 0], sizes = [8, 20], strides = [1, 1]} : vector<8x128xf32> to vector<8x20xf32>
    %46 = vector.broadcast %44 : vector<8x1xf32> to vector<8x20xf32>
    %47 = arith.divf %45, %46 : vector<8x20xf32>
    %c0_27 = arith.constant 0 : index
    %c0_28 = arith.constant 0 : index
    %48 = vector.load %arg10[%c0_27, %c0_28] : memref<8x20xf32, #tpu.memory_space<vmem>>, vector<8x20xf32>
    tpu.vector_store %arg10[%c0_27, %c0_28], %47 {strides = array<i32>} : memref<8x20xf32, #tpu.memory_space<vmem>>, vector<8x20xf32>,
    return
  }
  func.func @transform_0(%arg0: i32) -> (i32, i32) {
    %c0_i32 = arith.constant 0 : i32
    %c0_i32_0 = arith.constant 0 : i32
    return %arg0, %c0_i32 : i32, i32
  }
  func.func @transform_1(%arg0: i32) -> (i32, i32) {
    %c0_i32 = arith.constant 0 : i32
    %c0_i32_0 = arith.constant 0 : i32
    %c0_i32_1 = arith.constant 0 : i32
    return %c0_i32, %c0_i32_0 : i32, i32
  }
  func.func @transform_2(%arg0: i32) -> (i32, i32) {
    %c0_i32 = arith.constant 0 : i32
    %c0_i32_0 = arith.constant 0 : i32
    %c0_i32_1 = arith.constant 0 : i32
    return %c0_i32, %c0_i32_0 : i32, i32
  }
  func.func @transform_3(%arg0: i32) -> (i32, i32) {
    %c0_i32 = arith.constant 0 : i32
    %c0_i32_0 = arith.constant 0 : i32
    %c0_i32_1 = arith.constant 0 : i32
    return %c0_i32, %c0_i32_0 : i32, i32
  }
  func.func @transform_4(%arg0: i32) -> (i32, i32) {
    %c0_i32 = arith.constant 0 : i32
    %c0_i32_0 = arith.constant 0 : i32
    %c0_i32_1 = arith.constant 0 : i32
    return %c0_i32, %c0_i32_0 : i32, i32
  }
  func.func @transform_5(%arg0: i32) -> (i32, i32) {
    %c0_i32 = arith.constant 0 : i32
    %c0_i32_0 = arith.constant 0 : i32
    %c0_i32_1 = arith.constant 0 : i32
    return %c0_i32, %c0_i32_0 : i32, i32
  }
  func.func @transform_6(%arg0: i32) -> (i32, i32) {
    %c0_i32 = arith.constant 0 : i32
    %c0_i32_0 = arith.constant 0 : i32
    %c0_i32_1 = arith.constant 0 : i32
    return %c0_i32, %c0_i32_0 : i32, i32
  }
  func.func @transform_7(%arg0: i32) -> (i32, i32) {
    %c0_i32 = arith.constant 0 : i32
    %c0_i32_0 = arith.constant 0 : i32
    %c0_i32_1 = arith.constant 0 : i32
    return %c0_i32, %c0_i32_0 : i32, i32
  }
  func.func @transform_8(%arg0: i32) -> (i32, i32) {
    %c0_i32 = arith.constant 0 : i32
    %c0_i32_0 = arith.constant 0 : i32
    %c0_i32_1 = arith.constant 0 : i32
    return %c0_i32, %c0_i32_0 : i32, i32
  }
  func.func @transform_9(%arg0: i32) -> (i32, i32) {
    %c0_i32 = arith.constant 0 : i32
    %c0_i32_0 = arith.constant 0 : i32
    return %arg0, %c0_i32 : i32, i32
  }
}

</mosaic_0001>

<llo_original>
// kernel: _net_forward_impl.1
$region0: #{_net_forward_impl.1}
  #allocation0 [shape = 'u32[]', space=smem, size = 0x4, offset = 0x4, fixed_abs, tag = 'smem constant byte address 0x4 - core index']
  #allocation1 [shape = 'u32[72,128]{1,0:T(1,128)}', space=vmem, size = 0x9000, scoped, tag = 'internal scratch']
  %s0 = inlined_call_operand.vmem [shape: f32[16,1], index: 0, kind: input, shape index: {}]
  %s1 = inlined_call_operand.vmem [shape: f32[1,64], index: 1, kind: input, shape index: {}]
  %s2 = inlined_call_operand.vmem [shape: f32[1,64], index: 2, kind: input, shape index: {}]
  %s3 = inlined_call_operand.vmem [shape: f32[64,64], index: 3, kind: input, shape index: {}]
  %s4 = inlined_call_operand.vmem [shape: f32[1,64], index: 4, kind: input, shape index: {}]
  %s5 = inlined_call_operand.vmem [shape: f32[64,64], index: 5, kind: input, shape index: {}]
  %s6 = inlined_call_operand.vmem [shape: f32[1,64], index: 6, kind: input, shape index: {}]
  %s7 = inlined_call_operand.vmem [shape: f32[64,128], index: 7, kind: input, shape index: {}]
  %s8 = inlined_call_operand.vmem [shape: f32[1,128], index: 8, kind: input, shape index: {}]
  %s9 = inlined_call_operand.hbm [shape: f32[16,20], index: 9, kind: output, shape index: {}]
  %s10 = sld [smem:[#allocation0]]
  $region69: #{_net_forward_impl.1} parent=0
    _
  %s12 = ssub.s32 1, %s10
  %s13 = scalar_select 0, %s12, %s10
  $region1: #{_net_forward_impl.1} parent=0
    #allocation2 [shape = 'u8[8192]{0}', space=vmem, size = 0x2000, scoped, tag = 'output window, operand 0']
    #allocation3 [shape = 's32[2]{0}', space=sflag, size = 0x8, scoped, tag = 'scoped memory for _net_forward_impl.1']
    %14 = vsyncpa [#allocation3], 0
    %s15 = scalar_lea.sflag [#allocation3], 1
    %16 = vsyncpa %s15, 0
    loop: start=0, step=1, limit=4
    $region2: #{_net_forward_impl.1} parent=1 // loop_pre_header
      _
    $region3: #{_net_forward_impl.1} parent=1 // loop_header
      %s18 = sphi 0, %s22
      %p19 = scmp.ge.s32.totalorder %s18, 4
      %s28 = sphi 0, %s30
      %s31 = sphi 0, %s28
      %s32 = sphi 0, %s31
      %s48 = sphi 0, %s32
      %s52 = sphi 0, %s52
      %s54 = sphi 0, %s52
      %s55 = sphi 0, %s54
      %s69 = sphi 0, %s55
      %s73 = sphi 0, %s73
      %s75 = sphi 0, %s73
      %s76 = sphi 0, %s75
      %s90 = sphi 0, %s76
      %s94 = sphi 0, %s94
      %s96 = sphi 0, %s94
      %s97 = sphi 0, %s96
      %s111 = sphi 0, %s97
      %s115 = sphi 0, %s115
      %s117 = sphi 0, %s115
      %s118 = sphi 0, %s117
      %s132 = sphi 0, %s118
      %s136 = sphi 0, %s136
      %s138 = sphi 0, %s136
      %s139 = sphi 0, %s138
      %s153 = sphi 0, %s139
      %s157 = sphi 0, %s157
      %s159 = sphi 0, %s157
      %s160 = sphi 0, %s159
      %s174 = sphi 0, %s160
      %s178 = sphi 0, %s178
      %s180 = sphi 0, %s178
      %s181 = sphi 0, %s180
      %s195 = sphi 0, %s181
      %s199 = sphi 0, %s199
      %s201 = sphi 0, %s199
      %s202 = sphi 0, %s201
      %s216 = sphi 0, %s202
      %s222 = sphi 0, %s224
      %s225 = sphi 0, %s222
      %s226 = sphi 0, %s225
      %s242 = sphi 0, %s226
    $region4: #{_net_forward_impl.1} parent=1 // loop_header_branch
      %21 = sbr.rel (%p19) target = $region8
    $region5: #{_net_forward_impl.1} parent=1 // loop_body
      %s23 = ssub.s32 %s18, 1
      %s24 = ssub.s32 %s18, 2
      %s25 = sadd.s32 %s18, 1
      %s26 = ssub.s32 %s18, %s25
      %p27 = scmp.eq.s32.totalorder %s26, 0
      %s29 = sadd.s32 %s28, 1
      %s30 = scalar_select %p27, %s28, %s29
      %p33 = pneg %p27
      %p34 = scmp.eq.s32.totalorder %s18, 1
      %p35 = por %p33, %p34
      %p36 = scmp.ne.s32.totalorder %s28, %s31
      %p37 = scmp.eq.s32.totalorder %s18, 0
      %p38 = por %p36, %p37
      %p39 = scmp.ne.s32.totalorder %s28, %s31
      %p40 = scmp.eq.s32.totalorder %s23, 1
      %p41 = por %p39, %p40
      %p42 = scmp.ne.s32.totalorder %s31, %s32
      %p43 = scmp.eq.s32.totalorder %s23, 0
      %p44 = por %p42, %p43
      %p45 = scmp.ne.s32.totalorder %s31, %s32
      %p46 = scmp.eq.s32.totalorder %s24, 1
      %p47 = por %p45, %p46
      %p49 = scmp.ne.s32.totalorder %s32, %s48
      %p50 = scmp.eq.s32.totalorder %s24, 0
      %p51 = por %p49, %p50
      %s53 = sadd.s32 %s52, 1
      %p56 = scmp.eq.s32.totalorder %s18, 1
      %p57 = scmp.ne.s32.totalorder %s52, %s54
      %p58 = scmp.eq.s32.totalorder %s18, 0
      %p59 = por %p57, %p58
      %p60 = scmp.ne.s32.totalorder %s52, %s54
      %p61 = scmp.eq.s32.totalorder %s23, 1
      %p62 = por %p60, %p61
      %p63 = scmp.ne.s32.totalorder %s54, %s55
      %p64 = scmp.eq.s32.totalorder %s23, 0
      %p65 = por %p63, %p64
      %p66 = scmp.ne.s32.totalorder %s54, %s55
      %p67 = scmp.eq.s32.totalorder %s24, 1
      %p68 = por %p66, %p67
      %p70 = scmp.ne.s32.totalorder %s55, %s69
      %p71 = scmp.eq.s32.totalorder %s24, 0
      %p72 = por %p70, %p71
      %s74 = sadd.s32 %s73, 1
      %p77 = scmp.eq.s32.totalorder %s18, 1
      %p78 = scmp.ne.s32.totalorder %s73, %s75
      %p79 = scmp.eq.s32.totalorder %s18, 0
      %p80 = por %p78, %p79
      %p81 = scmp.ne.s32.totalorder %s73, %s75
      %p82 = scmp.eq.s32.totalorder %s23, 1
      %p83 = por %p81, %p82
      %p84 = scmp.ne.s32.totalorder %s75, %s76
      %p85 = scmp.eq.s32.totalorder %s23, 0
      %p86 = por %p84, %p85
      %p87 = scmp.ne.s32.totalorder %s75, %s76
      %p88 = scmp.eq.s32.totalorder %s24, 1
      %p89 = por %p87, %p88
      %p91 = scmp.ne.s32.totalorder %s76, %s90
      %p92 = scmp.eq.s32.totalorder %s24, 0
      %p93 = por %p91, %p92
      %s95 = sadd.s32 %s94, 1
      %p98 = scmp.eq.s32.totalorder %s18, 1
      %p99 = scmp.ne.s32.totalorder %s94, %s96
      %p100 = scmp.eq.s32.totalorder %s18, 0
      %p101 = por %p99, %p100
      %p102 = scmp.ne.s32.totalorder %s94, %s96
      %p103 = scmp.eq.s32.totalorder %s23, 1
      %p104 = por %p102, %p103
      %p105 = scmp.ne.s32.totalorder %s96, %s97
      %p106 = scmp.eq.s32.totalorder %s23, 0
      %p107 = por %p105, %p106
      %p108 = scmp.ne.s32.totalorder %s96, %s97
      %p109 = scmp.eq.s32.totalorder %s24, 1
      %p110 = por %p108, %p109
      %p112 = scmp.ne.s32.totalorder %s97, %s111
      %p113 = scmp.eq.s32.totalorder %s24, 0
      %p114 = por %p112, %p113
      %s116 = sadd.s32 %s115, 1
      %p119 = scmp.eq.s32.totalorder %s18, 1
      %p120 = scmp.ne.s32.totalorder %s115, %s117
      %p121 = scmp.eq.s32.totalorder %s18, 0
      %p122 = por %p120, %p121
      %p123 = scmp.ne.s32.totalorder %s115, %s117
      %p124 = scmp.eq.s32.totalorder %s23, 1
      %p125 = por %p123, %p124
      %p126 = scmp.ne.s32.totalorder %s117, %s118
      %p127 = scmp.eq.s32.totalorder %s23, 0
      %p128 = por %p126, %p127
      %p129 = scmp.ne.s32.totalorder %s117, %s118
      %p130 = scmp.eq.s32.totalorder %s24, 1
      %p131 = por %p129, %p130
      %p133 = scmp.ne.s32.totalorder %s118, %s132
      %p134 = scmp.eq.s32.totalorder %s24, 0
      %p135 = por %p133, %p134
      %s137 = sadd.s32 %s136, 1
      %p140 = scmp.eq.s32.totalorder %s18, 1
      %p141 = scmp.ne.s32.totalorder %s136, %s138
      %p142 = scmp.eq.s32.totalorder %s18, 0
      %p143 = por %p141, %p142
      %p144 = scmp.ne.s32.totalorder %s136, %s138
      %p145 = scmp.eq.s32.totalorder %s23, 1
      %p146 = por %p144, %p145
      %p147 = scmp.ne.s32.totalorder %s138, %s139
      %p148 = scmp.eq.s32.totalorder %s23, 0
      %p149 = por %p147, %p148
      %p150 = scmp.ne.s32.totalorder %s138, %s139
      %p151 = scmp.eq.s32.totalorder %s24, 1
      %p152 = por %p150, %p151
      %p154 = scmp.ne.s32.totalorder %s139, %s153
      %p155 = scmp.eq.s32.totalorder %s24, 0
      %p156 = por %p154, %p155
      %s158 = sadd.s32 %s157, 1
      %p161 = scmp.eq.s32.totalorder %s18, 1
      %p162 = scmp.ne.s32.totalorder %s157, %s159
      %p163 = scmp.eq.s32.totalorder %s18, 0
      %p164 = por %p162, %p163
      %p165 = scmp.ne.s32.totalorder %s157, %s159
      %p166 = scmp.eq.s32.totalorder %s23, 1
      %p167 = por %p165, %p166
      %p168 = scmp.ne.s32.totalorder %s159, %s160
      %p169 = scmp.eq.s32.totalorder %s23, 0
      %p170 = por %p168, %p169
      %p171 = scmp.ne.s32.totalorder %s159, %s160
      %p172 = scmp.eq.s32.totalorder %s24, 1
      %p173 = por %p171, %p172
      %p175 = scmp.ne.s32.totalorder %s160, %s174
      %p176 = scmp.eq.s32.totalorder %s24, 0
      %p177 = por %p175, %p176
      %s179 = sadd.s32 %s178, 1
      %p182 = scmp.eq.s32.totalorder %s18, 1
      %p183 = scmp.ne.s32.totalorder %s178, %s180
      %p184 = scmp.eq.s32.totalorder %s18, 0
      %p185 = por %p183, %p184
      %p186 = scmp.ne.s32.totalorder %s178, %s180
      %p187 = scmp.eq.s32.totalorder %s23, 1
      %p188 = por %p186, %p187
      %p189 = scmp.ne.s32.totalorder %s180, %s181
      %p190 = scmp.eq.s32.totalorder %s23, 0
      %p191 = por %p189, %p190
      %p192 = scmp.ne.s32.totalorder %s180, %s181
      %p193 = scmp.eq.s32.totalorder %s24, 1
      %p194 = por %p192, %p193
      %p196 = scmp.ne.s32.totalorder %s181, %s195
      %p197 = scmp.eq.s32.totalorder %s24, 0
      %p198 = por %p196, %p197
      %s200 = sadd.s32 %s199, 1
      %p203 = scmp.eq.s32.totalorder %s18, 1
      %p204 = scmp.ne.s32.totalorder %s199, %s201
      %p205 = scmp.eq.s32.totalorder %s18, 0
      %p206 = por %p204, %p205
      %p207 = scmp.ne.s32.totalorder %s199, %s201
      %p208 = scmp.eq.s32.totalorder %s23, 1
      %p209 = por %p207, %p208
      %p210 = scmp.ne.s32.totalorder %s201, %s202
      %p211 = scmp.eq.s32.totalorder %s23, 0
      %p212 = por %p210, %p211
      %p213 = scmp.ne.s32.totalorder %s201, %s202
      %p214 = scmp.eq.s32.totalorder %s24, 1
      %p215 = por %p213, %p214
      %p217 = scmp.ne.s32.totalorder %s202, %s216
      %p218 = scmp.eq.s32.totalorder %s24, 0
      %p219 = por %p217, %p218
      %s220 = ssub.s32 %s18, %s25
      %p221 = scmp.eq.s32.totalorder %s220, 0
      %s223 = sadd.s32 %s222, 1
      %s224 = scalar_select %p221, %s222, %s223
      %p227 = pneg %p221
      %p228 = scmp.eq.s32.totalorder %s18, 1
      %p229 = por %p227, %p228
      %p230 = scmp.ne.s32.totalorder %s222, %s225
      %p231 = scmp.eq.s32.totalorder %s18, 0
      %p232 = por %p230, %p231
      %p233 = scmp.ne.s32.totalorder %s222, %s225
      %p234 = scmp.eq.s32.totalorder %s23, 1
      %p235 = por %p233, %p234
      %p236 = scmp.ne.s32.totalorder %s225, %s226
      %p237 = scmp.eq.s32.totalorder %s23, 0
      %p238 = por %p236, %p237
      %p239 = scmp.ne.s32.totalorder %s225, %s226
      %p240 = scmp.eq.s32.totalorder %s24, 1
      %p241 = por %p239, %p240
      %p243 = scmp.ne.s32.totalorder %s226, %s242
      %p244 = scmp.eq.s32.totalorder %s24, 0
      %p245 = por %p243, %p244
      %p246 = scmp.le.s32.totalorder 1, %s18
      %p247 = scmp.lt.s32.totalorder %s18, 3
      %p248 = pnand %p246, %p247
      %p249 = pneg %p248
      // Predicated region
      $region9: #{_net_forward_impl.1} parent=5 // pred_check
        _
      $region10: #{_net_forward_impl.1} parent=5 // pred_check_branch
        %251 = sbr.rel (%p248) target = $region12
      $region11: #{_net_forward_impl.1} parent=5 // pred_region
        %s252 = ssub.s32 %s18, 1
        // Predicated region
        $region13: #{_net_forward_impl.1} parent=11 // pred_check
          %p253 = pneg %p65
        $region14: #{_net_forward_impl.1} parent=11 // pred_check_branch
          %255 = sbr.rel (%p253) target = $region16
        $region15: #{_net_forward_impl.1} parent=11 // pred_region
          _
        $region16: #{_net_forward_impl.1} parent=11 // pred_fallthru
          _
        // Predicated region
        $region17: #{_net_forward_impl.1} parent=11 // pred_check
          %p256 = pneg %p86
        $region18: #{_net_forward_impl.1} parent=11 // pred_check_branch
          %258 = sbr.rel (%p256) target = $region20
        $region19: #{_net_forward_impl.1} parent=11 // pred_region
          _
        $region20: #{_net_forward_impl.1} parent=11 // pred_fallthru
          _
        // Predicated region
        $region21: #{_net_forward_impl.1} parent=11 // pred_check
          %p259 = pneg %p107
        $region22: #{_net_forward_impl.1} parent=11 // pred_check_branch
          %261 = sbr.rel (%p259) target = $region24
        $region23: #{_net_forward_impl.1} parent=11 // pred_region
          _
        $region24: #{_net_forward_impl.1} parent=11 // pred_fallthru
          _
        // Predicated region
        $region25: #{_net_forward_impl.1} parent=11 // pred_check
          %p262 = pneg %p128
        $region26: #{_net_forward_impl.1} parent=11 // pred_check_branch
          %264 = sbr.rel (%p262) target = $region28
        $region27: #{_net_forward_impl.1} parent=11 // pred_region
          _
        $region28: #{_net_forward_impl.1} parent=11 // pred_fallthru
          _
        // Predicated region
        $region29: #{_net_forward_impl.1} parent=11 // pred_check
          %p265 = pneg %p149
        $region30: #{_net_forward_impl.1} parent=11 // pred_check_branch
          %267 = sbr.rel (%p265) target = $region32
        $region31: #{_net_forward_impl.1} parent=11 // pred_region
          _
        $region32: #{_net_forward_impl.1} parent=11 // pred_fallthru
          _
        // Predicated region
        $region33: #{_net_forward_impl.1} parent=11 // pred_check
          %p268 = pneg %p170
        $region34: #{_net_forward_impl.1} parent=11 // pred_check_branch
          %270 = sbr.rel (%p268) target = $region36
        $region35: #{_net_forward_impl.1} parent=11 // pred_region
          _
        $region36: #{_net_forward_impl.1} parent=11 // pred_fallthru
          _
        // Predicated region
        $region37: #{_net_forward_impl.1} parent=11 // pred_check
          %p271 = pneg %p191
        $region38: #{_net_forward_impl.1} parent=11 // pred_check_branch
          %273 = sbr.rel (%p271) target = $region40
        $region39: #{_net_forward_impl.1} parent=11 // pred_region
          _
        $region40: #{_net_forward_impl.1} parent=11 // pred_fallthru
          _
        // Predicated region
        $region41: #{_net_forward_impl.1} parent=11 // pred_check
          %p274 = pneg %p212
        $region42: #{_net_forward_impl.1} parent=11 // pred_check_branch
          %276 = sbr.rel (%p274) target = $region44
        $region43: #{_net_forward_impl.1} parent=11 // pred_region
          _
        $region44: #{_net_forward_impl.1} parent=11 // pred_fallthru
          _
      $region12: #{_net_forward_impl.1} parent=5 // pred_fallthru
        _
      %p277 = scmp.lt.s32.totalorder %s18, 2
      // Predicated region
      $region45: #{_net_forward_impl.1} parent=5 // pred_check
        %p278 = pneg %p277
      $region46: #{_net_forward_impl.1} parent=5 // pred_check_branch
        %280 = sbr.rel (%p278) target = $region48
      $region47: #{_net_forward_impl.1} parent=5 // pred_region
        // Predicated region
        $region49: #{_net_forward_impl.1} parent=47 // pred_check
          %p281 = pneg %p38
        $region50: #{_net_forward_impl.1} parent=47 // pred_check_branch
          %283 = sbr.rel (%p281) target = $region52
        $region51: #{_net_forward_impl.1} parent=47 // pred_region
          %p284 = scmp.lt.s32.totalorder %s18, 1
          %s285 = scalar_select %p284, %s18, 1
          %s286 = smul.addr %s285, 8
          %s287 = scalar_lea.vmem %s0, %s286
        $region52: #{_net_forward_impl.1} parent=47 // pred_fallthru
          _
      $region48: #{_net_forward_impl.1} parent=5 // pred_fallthru
        _
      %p288 = scmp.le.s32.totalorder 1, %s18
      %p289 = scmp.lt.s32.totalorder %s18, 3
      %p290 = pnand %p288, %p289
      %p291 = pneg %p290
      // Predicated region
      $region53: #{_net_forward_impl.1} parent=5 // pred_check
        _
      $region54: #{_net_forward_impl.1} parent=5 // pred_check_branch
        %293 = sbr.rel (%p290) target = $region56
      $region55: #{_net_forward_impl.1} parent=5 // pred_region
        %s294 = ssub.s32 %s18, 1
        %p295 = scmp.lt.s32.totalorder %s23, 1
        %s296 = scalar_select %p295, %s23, 1
        %s297 = smul.addr %s296, 8
        %s298 = scalar_lea.vmem %s0, %s297
        %p299 = pneg %p44
        %p300 = pneg %p41
        %p301 = pneg %p65
        %p302 = pneg %p62
        %p303 = pneg %p86
        %p304 = pneg %p83
        %p305 = pneg %p107
        %p306 = pneg %p104
        %p307 = pneg %p128
        %p308 = pneg %p125
        %p309 = pneg %p149
        %p310 = pneg %p146
        %p311 = pneg %p170
        %p312 = pneg %p167
        %p313 = pneg %p191
        %p314 = pneg %p188
        %p315 = pneg %p212
        %p316 = pneg %p209
        %p317 = pneg %p238
        %p318 = pneg %p235
        %s319 = sand.u32 %s225, 1
        %s320 = scalar_lea.sflag [#allocation3], %s319
        %s321 = sand.u32 %s225, 1
        %s322 = smul.addr %s321, 8
        %s323 = scalar_lea.vmem [#allocation2], %s322
        %p324 = scmp.lt.s32.totalorder %s23, 1
        %s325 = scalar_select %p324, %s23, 1
        %s326 = smul.addr %s325, 8
        %s327 = scalar_lea.vmem %s0, %s326
        %v328 = vld [vmem:[%s327] sm:$0xff]
        %v329 = vld [vmem:[%s1] sm:$0x1]
        %331 = vset.pattern.permute.xlu0 0
        %332 = vperm.xlu0 %331, %v328
        %v333 = vpop.permute.xlu0 %332
        %v336 = vperm.slane %v329, 0
        %v338 = vmul.f32 %v333, %v336
        %v339 = vld [vmem:[%s2] sm:$0x1]
        %v341 = vperm.slane %v339, 0
        %v343 = vadd.f32 %v338, %v341
        %vm344 = vcmp.gt.f32.partialorder %v343, 0.0
        %v345 = vmul.f32 %v343, 0.01
        %v346 = vsel %vm344, %v343, %v345
        %v347 = vld [vmem:[%s3] sm:$0xff]
        %v348 = vld [vmem:[%s3 + $0x8] sm:$0xff]
        %v349 = vld [vmem:[%s3 + $0x10] sm:$0xff]
        %v350 = vld [vmem:[%s3 + $0x18] sm:$0xff]
        %v351 = vld [vmem:[%s3 + $0x20] sm:$0xff]
        %v352 = vld [vmem:[%s3 + $0x28] sm:$0xff]
        %v353 = vld [vmem:[%s3 + $0x30] sm:$0xff]
        %v354 = vld [vmem:[%s3 + $0x38] sm:$0xff]
        %v355 = vld [vmem:[%s4] sm:$0x1]
        %v357 = vperm.slane %v355, 0
        %vm359 = vcmask 523264
        %v361 = vsel %vm359, %v346, 0
        %363 = vmatpush.msra.mxu0 0.0
        %364 = vmatpush.msra.mxu0 0.0
        %365 = vmatpush.msra.mxu0 0.0
        %366 = vmatpush.msra.mxu0 0.0
        %367 = vmatpush.msra.mxu0 0.0
        %368 = vmatpush.msra.mxu0 0.0
        %369 = vmatpush.msra.mxu0 0.0
        %370 = vmatpush.msra.mxu0 0.0
        %371 = vmatpush.msra.mxu0 %v354
        %372 = vmatpush.msra.mxu0 %v353
        %373 = vmatpush.msra.mxu0 %v352
        %374 = vmatpush.msra.mxu0 %v351
        %375 = vmatpush.msra.mxu0 %v350
        %376 = vmatpush.msra.mxu0 %v349
        %377 = vmatpush.msra.mxu0 %v348
        %378 = vmatpush.msra.mxu0 %v347
        %379 = vmatmul.f32.gmra.mxu0 %v361
        %v380 = vpop.f32.mrf.mxu0
        %v381 = vadd.f32 %v357, %v380
        %382 = vdwg.mxu0
        %vm383 = vcmp.gt.f32.partialorder %v381, 0.0
        %v384 = vmul.f32 %v381, 0.01
        %v385 = vsel %vm383, %v381, %v384
        %v386 = vld [vmem:[%s5] sm:$0xff]
        %v387 = vld [vmem:[%s5 + $0x8] sm:$0xff]
        %v388 = vld [vmem:[%s5 + $0x10] sm:$0xff]
        %v389 = vld [vmem:[%s5 + $0x18] sm:$0xff]
        %v390 = vld [vmem:[%s5 + $0x20] sm:$0xff]
        %v391 = vld [vmem:[%s5 + $0x28] sm:$0xff]
        %v392 = vld [vmem:[%s5 + $0x30] sm:$0xff]
        %v393 = vld [vmem:[%s5 + $0x38] sm:$0xff]
        %v394 = vld [vmem:[%s6] sm:$0x1]
        %v396 = vperm.slane %v394, 0
        %v399 = vsel %vm359, %v385, 0
        %401 = vmatpush.msra.mxu0 0.0
        %402 = vmatpush.msra.mxu0 0.0
        %403 = vmatpush.msra.mxu0 0.0
        %404 = vmatpush.msra.mxu0 0.0
        %405 = vmatpush.msra.mxu0 0.0
        %406 = vmatpush.msra.mxu0 0.0
        %407 = vmatpush.msra.mxu0 0.0
        %408 = vmatpush.msra.mxu0 0.0
        %409 = vmatpush.msra.mxu0 %v393
        %410 = vmatpush.msra.mxu0 %v392
        %411 = vmatpush.msra.mxu0 %v391
        %412 = vmatpush.msra.mxu0 %v390
        %413 = vmatpush.msra.mxu0 %v389
        %414 = vmatpush.msra.mxu0 %v388
        %415 = vmatpush.msra.mxu0 %v387
        %416 = vmatpush.msra.mxu0 %v386
        %417 = vmatmul.f32.gmra.mxu0 %v399
        %v418 = vpop.f32.mrf.mxu0
        %v419 = vadd.f32 %v396, %v418
        %420 = vdwg.mxu0
        %vm421 = vcmp.gt.f32.partialorder %v419, 0.0
        %v422 = vmul.f32 %v419, 0.01
        %v423 = vsel %vm421, %v419, %v422
        %v424 = vld [vmem:[%s7] sm:$0xff]
        %v425 = vld [vmem:[%s7 + $0x8] sm:$0xff]
        %v426 = vld [vmem:[%s7 + $0x10] sm:$0xff]
        %v427 = vld [vmem:[%s7 + $0x18] sm:$0xff]
        %v428 = vld [vmem:[%s7 + $0x20] sm:$0xff]
        %v429 = vld [vmem:[%s7 + $0x28] sm:$0xff]
        %v430 = vld [vmem:[%s7 + $0x30] sm:$0xff]
        %v431 = vld [vmem:[%s7 + $0x38] sm:$0xff]
        %v432 = vld [vmem:[%s8] sm:$0x1]
        %v434 = vperm.slane %v432, 0
        %v437 = vsel %vm359, %v423, 0
        %439 = vmatpush.msra.mxu0 0.0
        %440 = vmatpush.msra.mxu0 0.0
        %441 = vmatpush.msra.mxu0 0.0
        %442 = vmatpush.msra.mxu0 0.0
        %443 = vmatpush.msra.mxu0 0.0
        %444 = vmatpush.msra.mxu0 0.0
        %445 = vmatpush.msra.mxu0 0.0
        %446 = vmatpush.msra.mxu0 0.0
        %447 = vmatpush.msra.mxu0 %v431
        %448 = vmatpush.msra.mxu0 %v430
        %449 = vmatpush.msra.mxu0 %v429
        %450 = vmatpush.msra.mxu0 %v428
        %451 = vmatpush.msra.mxu0 %v427
        %452 = vmatpush.msra.mxu0 %v426
        %453 = vmatpush.msra.mxu0 %v425
        %454 = vmatpush.msra.mxu0 %v424
        %455 = vmatmul.f32.gmra.mxu0 %v437
        %v456 = vpop.f32.mrf.mxu0
        %v457 = vadd.f32 %v434, %v456
        %458 = vdwg.mxu0
        %459 = vmax.xlane.f32.xlu0 %v457
        %v460 = vpop.xlane.xlu0 %459
        %v461 = vsub.f32 %v457, %v460
        %v462 = vmul.f32 %v461, 1.442695
        %v463 = vpow.pop %v462
        %464 = vadd.xlane.f32.xlu0 %v463
        %v465 = vpop.xlane.xlu0 %464
        %v466 = vrcp.pop %v465
        %v467 = vmul.f32 %v465, %v466
        %v468 = vsub.f32 1.0, %v467
        %v469 = vmul.f32 %v466, %v468
        %v470 = vadd.f32 %v466, %v469
        %vm471 = vweird.f32 %v465
        %vm472 = vweird.f32 %v466
        %vm473 = vmor %vm471, %vm472
        %v474 = vsel %vm473, %v466, %v470
        %v475 = vand.u32 2147483647, %v465
        %vm476 = vcmp.eq.f32.partialorder %v475, 8.507059e+37
        %v477 = vand.u32 %v465, 2147483648
        %v478 = vor.u32 1.1754944e-38, %v477
        %v479 = vsel %vm476, %v478, %v474
        %v480 = vmul.f32 %v463, %v479
        %vm481 = vcmask 162816
        %482 = vst.msk [vmem:[%s323] sm:$0xff] %vm481, %v480
        %s483 = sand.u32 %s225, 1
        %s484 = scalar_lea.sflag [#allocation3], %s483
        %s485 = sand.u32 %s225, 1
        %s486 = smul.addr %s485, 8
        %s487 = scalar_lea.vmem [#allocation2], %s486
        // Predicated region
        $region57: #{_net_forward_impl.1} parent=55 // pred_check
          %p488 = pneg %p235
        $region58: #{_net_forward_impl.1} parent=55 // pred_check_branch
          %490 = sbr.rel (%p488) target = $region60
        $region59: #{_net_forward_impl.1} parent=55 // pred_region
          %492 = vsyncadd %s484, 0
          %s493 = smul.addr %s23, 8
          %s494 = scalar_lea.hbm %s9, %s493
          %s496 = sshll.u32 %s487, 4
          %s497 = int_to_ptr.vmem [resolvable:$true] %s496
          %s498 = sshll.u32 %s494, 4
          %s499 = int_to_ptr.hbm [resolvable:$true] %s498
          %501 = dma.vmem_to_hbm [thread:$0]  %s497, 128, %s499, %s484
        $region60: #{_net_forward_impl.1} parent=55 // pred_fallthru
          _
      $region56: #{_net_forward_impl.1} parent=5 // pred_fallthru
        _
      %p502 = scmp.le.s32.totalorder 2, %s18
      // Predicated region
      $region61: #{_net_forward_impl.1} parent=5 // pred_check
        %p503 = pneg %p502
      $region62: #{_net_forward_impl.1} parent=5 // pred_check_branch
        %505 = sbr.rel (%p503) target = $region64
      $region63: #{_net_forward_impl.1} parent=5 // pred_region
        %s506 = ssub.s32 %s18, 2
        // Predicated region
        $region65: #{_net_forward_impl.1} parent=63 // pred_check
          %p507 = pneg %p241
        $region66: #{_net_forward_impl.1} parent=63 // pred_check_branch
          %509 = sbr.rel (%p507) target = $region68
        $region67: #{_net_forward_impl.1} parent=63 // pred_region
          %s510 = sand.u32 %s226, 1
          %s511 = scalar_lea.sflag [#allocation3], %s510
          %s512 = sand.u32 %s226, 1
          %s513 = smul.addr %s512, 8
          %s514 = scalar_lea.vmem [#allocation2], %s513
          %516 = dma.done %s511, 128
        $region68: #{_net_forward_impl.1} parent=63 // pred_fallthru
          _
      $region64: #{_net_forward_impl.1} parent=5 // pred_fallthru
        _
    $region6: #{_net_forward_impl.1} parent=1 // loop_footer
      %s22 = sadd.s32 1, %s18
    $region7: #{_net_forward_impl.1} parent=1 // loop_footer_branch
      %17 = sbr.rel target = $region3
    $region8: #{_net_forward_impl.1} parent=1 // loop_exit
      _
    %517 = vsyncpa [#allocation3], 1
    %s518 = scalar_lea.sflag [#allocation3], 1
    %519 = vsyncpa %s518, 1

</llo_original>
